<compile_context>
chip_gen: v7x
topology: tpu7x:2x2x1
jax: 0.10.0
libtpu: 0.0.40
codegen_flags: <defaults>
</compile_context>

<pallas_src>
import functools

import jax
import jax.numpy as jnp
from jax.experimental import pallas as pl
from jax.experimental.pallas import tpu as pltpu

_LANE = 128
_MAX_SUBLANES_PER_STEP = 64  # 64*128 f32 elements/channel/step -> 96 KiB input block


def _saliency_kernel(x_ref, o_ref, acc_ref, *, n_valid: float):
    """One grid step of the colorfulness reduction.

    x_ref:   (3, SUB, 128) block of the zero-padded, flattened patch.
    o_ref:   (1,) f32 scalar output in SMEM.
    acc_ref: (4, SUB, 128) f32 running sums of [rg, rg^2, yb, yb^2].
    """
    step = pl.program_id(0)

    @pl.when(step == 0)
    def _init():
        acc_ref[...] = jnp.zeros_like(acc_ref)

    r = x_ref[0].astype(jnp.float32)
    g = x_ref[1].astype(jnp.float32)
    b = x_ref[2].astype(jnp.float32)

    rg = r - g
    yb = 0.5 * (r + g) - b

    # Hot loop: purely elementwise (VPU). No cross-lane reductions here.
    acc_ref[0] += rg
    acc_ref[1] += rg * rg
    acc_ref[2] += yb
    acc_ref[3] += yb * yb

    @pl.when(step == pl.num_programs(0) - 1)
    def _finalize():
        n = jnp.float32(n_valid)
        s_rg = jnp.sum(acc_ref[0])
        ss_rg = jnp.sum(acc_ref[1])
        s_yb = jnp.sum(acc_ref[2])
        ss_yb = jnp.sum(acc_ref[3])

        mu_rg = s_rg / n
        mu_yb = s_yb / n
        # torch.std() default is the unbiased (N-1) estimator.
        var_rg = (ss_rg - n * mu_rg * mu_rg) / (n - 1.0)
        var_yb = (ss_yb - n * mu_yb * mu_yb) / (n - 1.0)
        sigma_rg = jnp.sqrt(jnp.maximum(var_rg, 0.0)) + 1e-08
        sigma_yb = jnp.sqrt(jnp.maximum(var_yb, 0.0)) + 1e-08
        mu_rg = mu_rg + 1e-08
        mu_yb = mu_yb + 1e-08

        sl = (jnp.sqrt(sigma_rg * sigma_rg + sigma_yb * sigma_yb)
              + 0.3 * jnp.sqrt(mu_rg * mu_rg + mu_yb * mu_yb))
        o_ref[0] = sl / (3.0 * n)


def saliency_loss(adv_patch: jax.Array) -> jax.Array:
    """adv_patch: [3, H, W] float -> scalar float32 saliency (colorfulness) loss."""
    c, h, w = adv_patch.shape
    assert c == 3, "SaliencyLoss expects a [3, H, W] RGB patch"
    n = h * w

    # Lane-dense layout: flatten spatial dims and zero-pad up to whole (SUB,128)
    # tiles. Zero padding contributes 0 to every accumulated sum.
    rows = pl.cdiv(n, _LANE)
    sub = min(_MAX_SUBLANES_PER_STEP, ((rows + 7) // 8) * 8)
    rows_padded = pl.cdiv(rows, sub) * sub
    n_padded = rows_padded * _LANE

    flat = adv_patch.reshape(3, n)
    if n_padded != n:
        flat = jnp.pad(flat, ((0, 0), (0, n_padded - n)))
    x = flat.reshape(3, rows_padded, _LANE)

    num_steps = rows_padded // sub
    kernel = functools.partial(_saliency_kernel, n_valid=float(n))

    out = pl.pallas_call(
        kernel,
        out_shape=jax.ShapeDtypeStruct((1,), jnp.float32),
        grid=(num_steps,),
        in_specs=[pl.BlockSpec((3, sub, _LANE), lambda i: (0, i, 0))],
        out_specs=pl.BlockSpec(memory_space=pltpu.MemorySpace.SMEM),
        scratch_shapes=[pltpu.VMEM((4, sub, _LANE), jnp.float32)],
        compiler_params=pltpu.CompilerParams(
            # Single grid axis carries the running-sum accumulator -> "arbitrary".
            dimension_semantics=("arbitrary",),
        ),
    )(x)
    return out[0]


def _reference_saliency(adv_patch: jax.Array) -> jax.Array:
    """Pure-JAX port of the PyTorch SaliencyLoss.forward."""
    r, g, b = adv_patch[0], adv_patch[1], adv_patch[2]
    rg = r - g
    yb = 0.5 * (r + g) - b
    mu_rg = jnp.mean(rg) + 1e-08
    sigma_rg = jnp.std(rg, ddof=1) + 1e-08          # torch.std default: unbiased
    mu_yb = jnp.mean(yb) + 1e-08
    sigma_yb = jnp.std(yb, ddof=1) + 1e-08
    sl = jnp.sqrt(sigma_rg ** 2 + sigma_yb ** 2) + 0.3 * jnp.sqrt(mu_rg ** 2 + mu_yb ** 2)
    return sl / adv_patch.size


if __name__ == "__main__":
    key = jax.random.PRNGKey(0)
    k1, k2 = jax.random.split(key)

    # Small shape consistent with the module: adv_patch is [3, H, W].
    patch_small = jax.random.uniform(k1, (3, 16, 16), dtype=jnp.float32)
    # Slightly larger patch to exercise the multi-step (accumulating) grid path.
    patch_multi = jax.random.uniform(k2, (3, 96, 160), dtype=jnp.float32)

    for patch in (patch_small, patch_multi):
        got = saliency_loss(patch)
        jax.block_until_ready(got)
        want = _reference_saliency(patch)
        assert jnp.allclose(got, want, rtol=1e-4, atol=1e-7), (patch.shape, got, want)

    print("KERNEL_OK")
</pallas_src>

<mosaic_0001>
module attributes {stable_mosaic.version = 11 : i64} {
  func.func @_saliency_kernel(%arg0: i32, %arg1: memref<3x8x128xf32, #tpu.memory_space<vmem>>, %arg2: memref<1xf32, #tpu.memory_space<smem>>, %arg3: memref<4x8x128xf32, #tpu.memory_space<vmem>>) attributes {dimension_semantics = [#tpu.dimension_semantics<arbitrary>], iteration_bounds = array<i64: 1>, scalar_prefetch = 0 : i64, scratch_operands = 1 : i64, tpu.core_type = #tpu.core_type<tc>, window_params = [{transform_indices = @transform_0, window_bounds = array<i64: 3, 8, 128>}, {transform_indices = @transform_1, window_bounds = array<i64: 1>}]} {
    %c0_i32 = arith.constant 0 : i32
    %0 = arith.cmpi eq, %arg0, %c0_i32 : i32
    %1 = arith.extui %0 : i1 to i32
    %c0_i32_0 = arith.constant 0 : i32
    %2 = arith.cmpi ne, %1, %c0_i32_0 : i32
    scf.if %2 {
      %cst_32 = arith.constant 0.000000e+00 : f32
      %43 = vector.broadcast %cst_32 : f32 to vector<4x8x128xf32>
      %c0_33 = arith.constant 0 : index
      %c0_34 = arith.constant 0 : index
      %c0_35 = arith.constant 0 : index
      %44 = vector.load %arg3[%c0_33, %c0_34, %c0_35] : memref<4x8x128xf32, #tpu.memory_space<vmem>>, vector<4x8x128xf32>
      tpu.vector_store %arg3[%c0_33, %c0_34, %c0_35], %43 {strides = array<i32>} : memref<4x8x128xf32, #tpu.memory_space<vmem>>, vector<4x8x128xf32>,
    } else {
    }
    %c0 = arith.constant 0 : index
    %c0_1 = arith.constant 0 : index
    %c0_2 = arith.constant 0 : index
    %3 = vector.load %arg1[%c0, %c0_1, %c0_2] : memref<3x8x128xf32, #tpu.memory_space<vmem>>, vector<1x8x128xf32>
    %4 = vector.shape_cast %3 : vector<1x8x128xf32> to vector<8x128xf32>
    %c1 = arith.constant 1 : index
    %c0_3 = arith.constant 0 : index
    %c0_4 = arith.constant 0 : index
    %5 = vector.load %arg1[%c1, %c0_3, %c0_4] : memref<3x8x128xf32, #tpu.memory_space<vmem>>, vector<1x8x128xf32>
    %6 = vector.shape_cast %5 : vector<1x8x128xf32> to vector<8x128xf32>
    %c2 = arith.constant 2 : index
    %c0_5 = arith.constant 0 : index
    %c0_6 = arith.constant 0 : index
    %7 = vector.load %arg1[%c2, %c0_5, %c0_6] : memref<3x8x128xf32, #tpu.memory_space<vmem>>, vector<1x8x128xf32>
    %8 = vector.shape_cast %7 : vector<1x8x128xf32> to vector<8x128xf32>
    %9 = arith.subf %4, %6 : vector<8x128xf32>
    %10 = arith.addf %4, %6 : vector<8x128xf32>
    %cst = arith.constant 5.000000e-01 : f32
    %11 = vector.broadcast %cst : f32 to vector<8x128xf32>
    %12 = arith.mulf %11, %10 : vector<8x128xf32>
    %13 = arith.subf %12, %8 : vector<8x128xf32>
    %c0_7 = arith.constant 0 : index
    %c0_8 = arith.constant 0 : index
    %c0_9 = arith.constant 0 : index
    %14 = vector.load %arg3[%c0_7, %c0_8, %c0_9] : memref<4x8x128xf32, #tpu.memory_space<vmem>>, vector<1x8x128xf32>
    %15 = vector.shape_cast %14 : vector<1x8x128xf32> to vector<8x128xf32>
    %16 = arith.addf %15, %9 : vector<8x128xf32>
    %c0_10 = arith.constant 0 : index
    %c0_11 = arith.constant 0 : index
    %c0_12 = arith.constant 0 : index
    %17 = vector.load %arg3[%c0_10, %c0_11, %c0_12] : memref<4x8x128xf32, #tpu.memory_space<vmem>>, vector<1x8x128xf32>
    %18 = vector.shape_cast %17 : vector<1x8x128xf32> to vector<8x128xf32>
    %19 = vector.shape_cast %16 : vector<8x128xf32> to vector<1x8x128xf32>
    tpu.vector_store %arg3[%c0_10, %c0_11, %c0_12], %19 {strides = array<i32>} : memref<4x8x128xf32, #tpu.memory_space<vmem>>, vector<1x8x128xf32>,
    %c1_13 = arith.constant 1 : index
    %c0_14 = arith.constant 0 : index
    %c0_15 = arith.constant 0 : index
    %20 = vector.load %arg3[%c1_13, %c0_14, %c0_15] : memref<4x8x128xf32, #tpu.memory_space<vmem>>, vector<1x8x128xf32>
    %21 = vector.shape_cast %20 : vector<1x8x128xf32> to vector<8x128xf32>
    %22 = arith.mulf %9, %9 : vector<8x128xf32>
    %23 = arith.addf %21, %22 : vector<8x128xf32>
    %c1_16 = arith.constant 1 : index
    %c0_17 = arith.constant 0 : index
    %c0_18 = arith.constant 0 : index
    %24 = vector.load %arg3[%c1_16, %c0_17, %c0_18] : memref<4x8x128xf32, #tpu.memory_space<vmem>>, vector<1x8x128xf32>
    %25 = vector.shape_cast %24 : vector<1x8x128xf32> to vector<8x128xf32>
    %26 = vector.shape_cast %23 : vector<8x128xf32> to vector<1x8x128xf32>
    tpu.vector_store %arg3[%c1_16, %c0_17, %c0_18], %26 {strides = array<i32>} : memref<4x8x128xf32, #tpu.memory_space<vmem>>, vector<1x8x128xf32>,
    %c2_19 = arith.constant 2 : index
    %c0_20 = arith.constant 0 : index
    %c0_21 = arith.constant 0 : index
    %27 = vector.load %arg3[%c2_19, %c0_20, %c0_21] : memref<4x8x128xf32, #tpu.memory_space<vmem>>, vector<1x8x128xf32>
    %28 = vector.shape_cast %27 : vector<1x8x128xf32> to vector<8x128xf32>
    %29 = arith.addf %28, %13 : vector<8x128xf32>
    %c2_22 = arith.constant 2 : index
    %c0_23 = arith.constant 0 : index
    %c0_24 = arith.constant 0 : index
    %30 = vector.load %arg3[%c2_22, %c0_23, %c0_24] : memref<4x8x128xf32, #tpu.memory_space<vmem>>, vector<1x8x128xf32>
    %31 = vector.shape_cast %30 : vector<1x8x128xf32> to vector<8x128xf32>
    %32 = vector.shape_cast %29 : vector<8x128xf32> to vector<1x8x128xf32>
    tpu.vector_store %arg3[%c2_22, %c0_23, %c0_24], %32 {strides = array<i32>} : memref<4x8x128xf32, #tpu.memory_space<vmem>>, vector<1x8x128xf32>,
    %c3 = arith.constant 3 : index
    %c0_25 = arith.constant 0 : index
    %c0_26 = arith.constant 0 : index
    %33 = vector.load %arg3[%c3, %c0_25, %c0_26] : memref<4x8x128xf32, #tpu.memory_space<vmem>>, vector<1x8x128xf32>
    %34 = vector.shape_cast %33 : vector<1x8x128xf32> to vector<8x128xf32>
    %35 = arith.mulf %13, %13 : vector<8x128xf32>
    %36 = arith.addf %34, %35 : vector<8x128xf32>
    %c3_27 = arith.constant 3 : index
    %c0_28 = arith.constant 0 : index
    %c0_29 = arith.constant 0 : index
    %37 = vector.load %arg3[%c3_27, %c0_28, %c0_29] : memref<4x8x128xf32, #tpu.memory_space<vmem>>, vector<1x8x128xf32>
    %38 = vector.shape_cast %37 : vector<1x8x128xf32> to vector<8x128xf32>
    %39 = vector.shape_cast %36 : vector<8x128xf32> to vector<1x8x128xf32>
    tpu.vector_store %arg3[%c3_27, %c0_28, %c0_29], %39 {strides = array<i32>} : memref<4x8x128xf32, #tpu.memory_space<vmem>>, vector<1x8x128xf32>,
    %c0_i32_30 = arith.constant 0 : i32
    %40 = arith.cmpi eq, %arg0, %c0_i32_30 : i32
    %41 = arith.extui %40 : i1 to i32
    %c0_i32_31 = arith.constant 0 : i32
    %42 = arith.cmpi ne, %41, %c0_i32_31 : i32
    scf.if %42 {
      %c0_32 = arith.constant 0 : index
      %c0_33 = arith.constant 0 : index
      %c0_34 = arith.constant 0 : index
      %43 = vector.load %arg3[%c0_32, %c0_33, %c0_34] : memref<4x8x128xf32, #tpu.memory_space<vmem>>, vector<1x8x128xf32>
      %44 = vector.shape_cast %43 : vector<1x8x128xf32> to vector<8x128xf32>
      %45 = vector.shape_cast %44 : vector<8x128xf32> to vector<1x8x128xf32>
      %cst_35 = arith.constant dense<0.000000e+00> : vector<1xf32>
      %46 = vector.multi_reduction <add>, %45, %cst_35 [1, 2] : vector<1x8x128xf32> to vector<1xf32>
      %47 = vector.shape_cast %46 : vector<1xf32> to vector<1x1x1xf32>
      %48 = vector.extract %47[0, 0, 0] : f32 from vector<1x1x1xf32>
      %c1_36 = arith.constant 1 : index
      %c0_37 = arith.constant 0 : index
      %c0_38 = arith.constant 0 : index
      %49 = vector.load %arg3[%c1_36, %c0_37, %c0_38] : memref<4x8x128xf32, #tpu.memory_space<vmem>>, vector<1x8x128xf32>
      %50 = vector.shape_cast %49 : vector<1x8x128xf32> to vector<8x128xf32>
      %51 = vector.shape_cast %50 : vector<8x128xf32> to vector<1x8x128xf32>
      %cst_39 = arith.constant dense<0.000000e+00> : vector<1xf32>
      %52 = vector.multi_reduction <add>, %51, %cst_39 [1, 2] : vector<1x8x128xf32> to vector<1xf32>
      %53 = vector.shape_cast %52 : vector<1xf32> to vector<1x1x1xf32>
      %54 = vector.extract %53[0, 0, 0] : f32 from vector<1x1x1xf32>
      %c2_40 = arith.constant 2 : index
      %c0_41 = arith.constant 0 : index
      %c0_42 = arith.constant 0 : index
      %55 = vector.load %arg3[%c2_40, %c0_41, %c0_42] : memref<4x8x128xf32, #tpu.memory_space<vmem>>, vector<1x8x128xf32>
      %56 = vector.shape_cast %55 : vector<1x8x128xf32> to vector<8x128xf32>
      %57 = vector.shape_cast %56 : vector<8x128xf32> to vector<1x8x128xf32>
      %cst_43 = arith.constant dense<0.000000e+00> : vector<1xf32>
      %58 = vector.multi_reduction <add>, %57, %cst_43 [1, 2] : vector<1x8x128xf32> to vector<1xf32>
      %59 = vector.shape_cast %58 : vector<1xf32> to vector<1x1x1xf32>
      %60 = vector.extract %59[0, 0, 0] : f32 from vector<1x1x1xf32>
      %c3_44 = arith.constant 3 : index
      %c0_45 = arith.constant 0 : index
      %c0_46 = arith.constant 0 : index
      %61 = vector.load %arg3[%c3_44, %c0_45, %c0_46] : memref<4x8x128xf32, #tpu.memory_space<vmem>>, vector<1x8x128xf32>
      %62 = vector.shape_cast %61 : vector<1x8x128xf32> to vector<8x128xf32>
      %63 = vector.shape_cast %62 : vector<8x128xf32> to vector<1x8x128xf32>
      %cst_47 = arith.constant dense<0.000000e+00> : vector<1xf32>
      %64 = vector.multi_reduction <add>, %63, %cst_47 [1, 2] : vector<1x8x128xf32> to vector<1xf32>
      %65 = vector.shape_cast %64 : vector<1xf32> to vector<1x1x1xf32>
      %66 = vector.extract %65[0, 0, 0] : f32 from vector<1x1x1xf32>
      %cst_48 = arith.constant 2.560000e+02 : f32
      %67 = arith.divf %48, %cst_48 : f32
      %cst_49 = arith.constant 2.560000e+02 : f32
      %68 = arith.divf %60, %cst_49 : f32
      %cst_50 = arith.constant 2.560000e+02 : f32
      %69 = arith.mulf %cst_50, %67 : f32
      %70 = arith.mulf %69, %67 : f32
      %71 = arith.subf %54, %70 : f32
      %cst_51 = arith.constant 2.560000e+02 : f32
      %cst_52 = arith.constant 1.000000e+00 : f32
      %72 = arith.subf %cst_51, %cst_52 : f32
      %73 = arith.divf %71, %72 : f32
      %cst_53 = arith.constant 2.560000e+02 : f32
      %74 = arith.mulf %cst_53, %68 : f32
      %75 = arith.mulf %74, %68 : f32
      %76 = arith.subf %66, %75 : f32
      %cst_54 = arith.constant 2.560000e+02 : f32
      %cst_55 = arith.constant 1.000000e+00 : f32
      %77 = arith.subf %cst_54, %cst_55 : f32
      %78 = arith.divf %76, %77 : f32
      %cst_56 = arith.constant 0.000000e+00 : f32
      %79 = arith.maximumf %73, %cst_56 : f32
      %80 = math.sqrt %79 : f32
      %cst_57 = arith.constant 9.99999993E-9 : f32
      %81 = arith.addf %80, %cst_57 : f32
      %cst_58 = arith.constant 0.000000e+00 : f32
      %82 = arith.maximumf %78, %cst_58 : f32
      %83 = math.sqrt %82 : f32
      %cst_59 = arith.constant 9.99999993E-9 : f32
      %84 = arith.addf %83, %cst_59 : f32
      %cst_60 = arith.constant 9.99999993E-9 : f32
      %85 = arith.addf %67, %cst_60 : f32
      %cst_61 = arith.constant 9.99999993E-9 : f32
      %86 = arith.addf %68, %cst_61 : f32
      %87 = arith.mulf %81, %81 : f32
      %88 = arith.mulf %84, %84 : f32
      %89 = arith.addf %87, %88 : f32
      %90 = math.sqrt %89 : f32
      %91 = arith.mulf %85, %85 : f32
      %92 = arith.mulf %86, %86 : f32
      %93 = arith.addf %91, %92 : f32
      %94 = math.sqrt %93 : f32
      %cst_62 = arith.constant 3.000000e-01 : f32
      %95 = arith.mulf %cst_62, %94 : f32
      %96 = arith.addf %90, %95 : f32
      %cst_63 = arith.constant 3.000000e+00 : f32
      %cst_64 = arith.constant 2.560000e+02 : f32
      %97 = arith.mulf %cst_63, %cst_64 : f32
      %98 = arith.divf %96, %97 : f32
      %c0_65 = arith.constant 0 : index
      %99 = memref.load %arg2[%c0_65] : memref<1xf32, #tpu.memory_space<smem>>
      memref.store %98, %arg2[%c0_65] : memref<1xf32, #tpu.memory_space<smem>>
    } else {
    }
    return
  }
  func.func @transform_0(%arg0: i32) -> (i32, i32, i32) {
    %c0_i32 = arith.constant 0 : i32
    %c0_i32_0 = arith.constant 0 : i32
    %c0_i32_1 = arith.constant 0 : i32
    return %c0_i32, %arg0, %c0_i32_0 : i32, i32, i32
  }
  func.func @transform_1(%arg0: i32) -> i32 {
    %c0_i32 = arith.constant 0 : i32
    %c0_i32_0 = arith.constant 0 : i32
    return %c0_i32 : i32
  }
}

</mosaic_0001>

<llo_original>
// kernel: tpu_custom_call.1
$region0: #{tpu_custom_call.1}
  #allocation0 [shape = 'u32[]', space=smem, size = 0x4, offset = 0x4, fixed_abs, tag = 'smem constant byte address 0x4 - core index']
  #allocation1 [shape = 'u32[144,128]{1,0:T(1,128)}', space=vmem, size = 0x12000, scoped, tag = 'internal scratch']
  #allocation2 [shape = 'f32[4,8,128]{2,1,0:T(8,128)}', space=vmem, size = 0x4000, scoped, tag = 'scratch operand']
  %s0 = inlined_call_operand.hbm [shape: f32[3,8,128], index: 0, kind: input, shape index: {}]
  %s1 = inlined_call_operand.hbm [shape: f32[1], index: 1, kind: output, shape index: {}]
  %s2 = sld [smem:[#allocation0]]
  $region26: #{tpu_custom_call.1} parent=0
    _
  %s4 = ssub.s32 1, %s2
  %s5 = scalar_select 0, %s4, %s2
  $region1: #{tpu_custom_call.1} parent=0
    #allocation3 [shape = 'u8[12288]{0}', space=vmem, size = 0x3000, scoped, tag = 'input window, operand 0, single buffered']
    #allocation4 [shape = 's32[1]{0}', space=sflag, size = 0x4, scoped, tag = 'scoped memory for tpu_custom_call.1']
    #allocation5 [shape = 's32[1]{0}', space=sflag, size = 0x4, scoped, tag = 'scoped memory for tpu_custom_call.1']
    #allocation6 [shape = 'u8[512]{0}', space=smem, size = 0x200, scoped, tag = 'output window, operand 0, single buffered']
    %6 = vsyncpa [#allocation4], 0
    %7 = vsyncpa [#allocation5], 0
    // Predicated region
    $region2: #{tpu_custom_call.1} parent=1 // pred_check
      _
    $region3: #{tpu_custom_call.1} parent=1 // pred_check_branch
      %9 = sbr.rel (0) target = $region5
    $region4: #{tpu_custom_call.1} parent=1 // pred_region
      %s11 = ssub.s32 384, 384
      %12 = vsyncadd [#allocation4], %s11
      %s13 = sshll.u32 [#allocation3], 4
      %s14 = int_to_ptr.vmem [resolvable:$true] %s13
      %19 = dma.hbm_to_vmem [thread:$0]  %s0, 384, %s14, [#allocation4], 128, 128, 8
    $region5: #{tpu_custom_call.1} parent=1 // pred_fallthru
      _
    // Predicated region
    $region6: #{tpu_custom_call.1} parent=1 // pred_check
      _
    $region7: #{tpu_custom_call.1} parent=1 // pred_check_branch
      %21 = sbr.rel (0) target = $region9
    $region8: #{tpu_custom_call.1} parent=1 // pred_region
      %22 = dma.done [#allocation4], 384
    $region9: #{tpu_custom_call.1} parent=1 // pred_fallthru
      _
    %p23 = scmp.eq.s32.totalorder 0, 0
    // Predicated region
    $region10: #{tpu_custom_call.1} parent=1 // pred_check
      %p24 = pneg %p23
    $region11: #{tpu_custom_call.1} parent=1 // pred_check_branch
      %26 = sbr.rel (%p24) target = $region13
    $region12: #{tpu_custom_call.1} parent=1 // pred_region
      %27 = vst [vmem:[#allocation2] sm:$0xff] 0.0
      %28 = vst [vmem:[#allocation2 + $0x8] sm:$0xff] 0.0
      %29 = vst [vmem:[#allocation2 + $0x10] sm:$0xff] 0.0
      %30 = vst [vmem:[#allocation2 + $0x18] sm:$0xff] 0.0
    $region13: #{tpu_custom_call.1} parent=1 // pred_fallthru
      _
    %v31 = vld [vmem:[#allocation3] sm:$0xff]
    %s32 = scalar_lea.vmem [#allocation3], 8
    %v33 = vld [vmem:[%s32] sm:$0xff]
    %s34 = scalar_lea.vmem [#allocation3], 16
    %v35 = vld [vmem:[%s34] sm:$0xff]
    %v36 = vsub.f32 %v31, %v33
    %v37 = vadd.f32 %v31, %v33
    %v38 = vmul.f32 %v37, 0.5
    %v39 = vsub.f32 %v38, %v35
    %v40 = vld [vmem:[#allocation2] sm:$0xff]
    %v41 = vadd.f32 %v40, %v36
    %42 = vst [vmem:[#allocation2] sm:$0xff] %v41
    %s43 = scalar_lea.vmem [#allocation2], 8
    %v44 = vld [vmem:[%s43] sm:$0xff]
    %v45 = vmul.f32 %v36, %v36
    %v46 = vadd.f32 %v44, %v45
    %47 = vst [vmem:[%s43] sm:$0xff] %v46
    %s48 = scalar_lea.vmem [#allocation2], 16
    %v49 = vld [vmem:[%s48] sm:$0xff]
    %v50 = vadd.f32 %v49, %v39
    %51 = vst [vmem:[%s48] sm:$0xff] %v50
    %s52 = scalar_lea.vmem [#allocation2], 24
    %v53 = vld [vmem:[%s52] sm:$0xff]
    %v54 = vmul.f32 %v39, %v39
    %v55 = vadd.f32 %v53, %v54
    %56 = vst [vmem:[%s52] sm:$0xff] %v55
    // Predicated region
    $region14: #{tpu_custom_call.1} parent=1 // pred_check
      %p57 = pneg %p23
    $region15: #{tpu_custom_call.1} parent=1 // pred_check_branch
      %59 = sbr.rel (%p57) target = $region17
    $region16: #{tpu_custom_call.1} parent=1 // pred_region
      %v60 = vld [vmem:[#allocation2] sm:$0xff]
      %61 = vadd.xlane.f32.xlu0 %v60
      %v62 = vpop.xlane.xlu0 %61
      %v63 = vrot.slane %v62, 4
      %v64 = vadd.f32 %v62, %v63
      %v65 = vrot.slane %v64, 2
      %v66 = vadd.f32 %v64, %v65
      %v67 = vrot.slane %v66, 1
      %v68 = vadd.f32 %v66, %v67
      %s69 = vtos %v68
      %v70 = vld [vmem:[%s43] sm:$0xff]
      %71 = vadd.xlane.f32.xlu0 %v70
      %v72 = vpop.xlane.xlu0 %71
      %v73 = vrot.slane %v72, 4
      %v74 = vadd.f32 %v72, %v73
      %v75 = vrot.slane %v74, 2
      %v76 = vadd.f32 %v74, %v75
      %v77 = vrot.slane %v76, 1
      %v78 = vadd.f32 %v76, %v77
      %s79 = vtos %v78
      %v80 = vld [vmem:[%s48] sm:$0xff]
      %81 = vadd.xlane.f32.xlu0 %v80
      %v82 = vpop.xlane.xlu0 %81
      %v83 = vrot.slane %v82, 4
      %v84 = vadd.f32 %v82, %v83
      %v85 = vrot.slane %v84, 2
      %v86 = vadd.f32 %v84, %v85
      %v87 = vrot.slane %v86, 1
      %v88 = vadd.f32 %v86, %v87
      %s89 = vtos %v88
      %v90 = vld [vmem:[%s52] sm:$0xff]
      %91 = vadd.xlane.f32.xlu0 %v90
      %v92 = vpop.xlane.xlu0 %91
      %v93 = vrot.slane %v92, 4
      %v94 = vadd.f32 %v92, %v93
      %v95 = vrot.slane %v94, 2
      %v96 = vadd.f32 %v94, %v95
      %v97 = vrot.slane %v96, 1
      %v98 = vadd.f32 %v96, %v97
      %s99 = vtos %v98
      %v100 = vrcp.pop 256.0
      %s101 = vtos %v100
      %s102 = smul.f32 %s69, %s101
      %v103 = vrcp.pop 256.0
      %s104 = vtos %v103
      %s105 = smul.f32 %s89, %s104
      %s106 = smul.f32 %s102, 256.0
      %s107 = smul.f32 %s106, %s102
      %s108 = ssub.f32 %s79, %s107
      %v109 = vrcp.pop 255.0
      %s110 = vtos %v109
      %s111 = smul.f32 %s108, %s110
      %s112 = smul.f32 %s105, 256.0
      %s113 = smul.f32 %s112, %s105
      %s114 = ssub.f32 %s99, %s113
      %v115 = vrcp.pop 255.0
      %s116 = vtos %v115
      %s117 = smul.f32 %s114, %s116
      %s118 = smax.f32 %s111, 0.0
      %v119 = vstv %s118
      %v120 = vrsqrt.pop %v119
      %v121 = vmul.f32 %v119, %v120
      %vm122 = vcmp.eq.f32.partialorder %v119, inf
      %v123 = vsel %vm122, %v119, %v121
      %vm124 = vcmp.eq.f32.partialorder %v119, 0.0
      %v125 = vand.u32 %v119, 2147483648
      %v126 = vsel %vm124, %v125, %v123
      %s127 = vtos %v126
      %s128 = sadd.f32 %s127, 1e-08
      %s129 = smax.f32 %s117, 0.0
      %v130 = vstv %s129
      %v131 = vrsqrt.pop %v130
      %v132 = vmul.f32 %v130, %v131
      %vm133 = vcmp.eq.f32.partialorder %v130, inf
      %v134 = vsel %vm133, %v130, %v132
      %vm135 = vcmp.eq.f32.partialorder %v130, 0.0
      %v136 = vand.u32 %v130, 2147483648
      %v137 = vsel %vm135, %v136, %v134
      %s138 = vtos %v137
      %s139 = sadd.f32 %s138, 1e-08
      %s140 = sadd.f32 %s102, 1e-08
      %s141 = sadd.f32 %s105, 1e-08
      %s142 = smul.f32 %s128, %s128
      %s143 = smul.f32 %s139, %s139
      %s144 = sadd.f32 %s142, %s143
      %v145 = vstv %s144
      %v146 = vrsqrt.pop %v145
      %v147 = vmul.f32 %v145, %v146
      %vm148 = vcmp.eq.f32.partialorder %v145, inf
      %v149 = vsel %vm148, %v145, %v147
      %vm150 = vcmp.eq.f32.partialorder %v145, 0.0
      %v151 = vand.u32 %v145, 2147483648
      %v152 = vsel %vm150, %v151, %v149
      %s153 = vtos %v152
      %s154 = smul.f32 %s140, %s140
      %s155 = smul.f32 %s141, %s141
      %s156 = sadd.f32 %s154, %s155
      %v157 = vstv %s156
      %v158 = vrsqrt.pop %v157
      %v159 = vmul.f32 %v157, %v158
      %vm160 = vcmp.eq.f32.partialorder %v157, inf
      %v161 = vsel %vm160, %v157, %v159
      %vm162 = vcmp.eq.f32.partialorder %v157, 0.0
      %v163 = vand.u32 %v157, 2147483648
      %v164 = vsel %vm162, %v163, %v161
      %s165 = vtos %v164
      %s166 = smul.f32 %s165, 0.3
      %s167 = sadd.f32 %s153, %s166
      %v168 = vrcp.pop 768.0
      %s169 = vtos %v168
      %s170 = smul.f32 %s167, %s169
      %s171 = scalar_lea.smem [#allocation6], 0
      %172 = sst [smem:[%s171]] %s170
    $region17: #{tpu_custom_call.1} parent=1 // pred_fallthru
      _
    // Predicated region
    $region18: #{tpu_custom_call.1} parent=1 // pred_check
      _
    $region19: #{tpu_custom_call.1} parent=1 // pred_check_branch
      %174 = sbr.rel (0) target = $region21
    $region20: #{tpu_custom_call.1} parent=1 // pred_region
      %s176 = ssub.s32 16, 16
      %177 = vsyncadd [#allocation5], %s176
      %180 = dma.smem_to_hbm [#allocation6], 16, %s1, [#allocation5]
    $region21: #{tpu_custom_call.1} parent=1 // pred_fallthru
      _
    // Predicated region
    $region22: #{tpu_custom_call.1} parent=1 // pred_check
      _
    $region23: #{tpu_custom_call.1} parent=1 // pred_check_branch
      %182 = sbr.rel (0) target = $region25
    $region24: #{tpu_custom_call.1} parent=1 // pred_region
      %183 = dma.done [#allocation5], 16
    $region25: #{tpu_custom_call.1} parent=1 // pred_fallthru
      _
    %184 = sfence
    %185 = vsyncpa [#allocation4], 1
    %186 = vsyncpa [#allocation5], 1

</llo_original>
